<compile_context>
chip_gen: v7x
topology: tpu7x:2x2x1
jax: 0.10.0
libtpu: 0.0.40
codegen_flags: <defaults>
</compile_context>

<pallas_src>
import jax
import jax.numpy as jnp
from jax.experimental import pallas as pl
from jax.experimental.pallas import tpu as pltpu

# (in_features, out_features) per layer, as in the PyTorch module.
LAYER_DIMS = [(4, 128), (128, 64), (64, 32), (32, 16), (16, 1)]

# Default batch-tile (lanes).  Largest live activation is (128, TILE_B) f32:
# 1024 lanes -> 0.5 MiB, comfortably inside VMEM on v5e/v6e (128 MiB) and
# v7x (64 MiB) even with double-buffered x/out tiles.  Bump on v6e if desired.
DEFAULT_TILE_B = 1024


def _fcnn4_kernel(x_ref,
                  w0_ref, b0_ref,
                  w1_ref, b1_ref,
                  w2_ref, b2_ref,
                  w3_ref, b3_ref,
                  w4_ref, b4_ref,
                  out_ref):
    # x: (4, TILE_B) -- features on sublanes, batch on lanes.
    x = x_ref[...].astype(jnp.float32)

    # 'input' : Linear(4 -> 128), no activation
    h = jnp.dot(w0_ref[...], x, preferred_element_type=jnp.float32) + b0_ref[...]

    # 'linear1' + 'relu2'
    h = jnp.dot(w1_ref[...], h, preferred_element_type=jnp.float32) + b1_ref[...]
    h = jnp.maximum(h, 0.0)

    # 'linear2' + 'relu3'
    h = jnp.dot(w2_ref[...], h, preferred_element_type=jnp.float32) + b2_ref[...]
    h = jnp.maximum(h, 0.0)

    # 'linear3' + 'relu4'
    h = jnp.dot(w3_ref[...], h, preferred_element_type=jnp.float32) + b3_ref[...]
    h = jnp.maximum(h, 0.0)

    # 'output' + 'sigmoid1' : (1, TILE_B) lane-dense store
    z = jnp.dot(w4_ref[...], h, preferred_element_type=jnp.float32) + b4_ref[...]
    out_ref[...] = pl.reciprocal(1.0 + jnp.exp(-z), approx=True)


def fcnn4_forward(x, params, *, tile_b=DEFAULT_TILE_B):
    """x: (B, 4). params: list of (W, b) with W (out, in) and b (out, 1).

    Returns (B, 1) float32, matching the PyTorch module's forward."""
    B, F = x.shape
    assert F == 4, "FCNN4 expects 4 input features"

    # Lane-dense batch tile: multiple of 128, shrunk for small batches.
    b_rounded = ((B + 127) // 128) * 128
    tile_b = max(128, min(tile_b, b_rounded))
    num_tiles = pl.cdiv(B, tile_b)
    b_pad = num_tiles * tile_b

    # Batch -> lanes.  Pad (with zeros) so every tile stays full / unmasked;
    # padded columns are sliced off after the call.
    xt = jnp.transpose(x)                       # (4, B)
    if b_pad != B:
        xt = jnp.pad(xt, ((0, 0), (0, b_pad - B)))

    flat_params = []
    weight_specs = []
    for w, b in params:
        flat_params += [w, b]
        # Constant index maps: weights/biases resident in VMEM across tiles.
        weight_specs.append(pl.BlockSpec(w.shape, lambda i: (0, 0)))
        weight_specs.append(pl.BlockSpec(b.shape, lambda i: (0, 0)))

    out = pl.pallas_call(
        _fcnn4_kernel,
        out_shape=jax.ShapeDtypeStruct((1, b_pad), jnp.float32),
        grid=(num_tiles,),
        in_specs=[pl.BlockSpec((4, tile_b), lambda i: (0, i))] + weight_specs,
        out_specs=pl.BlockSpec((1, tile_b), lambda i: (0, i)),
        compiler_params=pltpu.CompilerParams(
            dimension_semantics=("parallel",)),
    )(xt, *flat_params)

    return jnp.transpose(out[:, :B])            # (B, 1)


def init_params(key):
    """PyTorch-Linear-style init U(-1/sqrt(fan_in), 1/sqrt(fan_in)).
    Weights stored in native (out_features, in_features) layout,
    biases as (out_features, 1)."""
    params = []
    for fan_in, fan_out in LAYER_DIMS:
        key, kw, kb = jax.random.split(key, 3)
        bound = 1.0 / (fan_in ** 0.5)
        w = jax.random.uniform(kw, (fan_out, fan_in), jnp.float32, -bound, bound)
        b = jax.random.uniform(kb, (fan_out, 1), jnp.float32, -bound, bound)
        params.append((w, b))
    return params


def reference_forward(x, params):
    """Pure-JAX reference in the PyTorch (B, features) layout."""
    h = x
    for i, (w, b) in enumerate(params):
        h = h @ w.T + b.T
        if i in (1, 2, 3):                      # relu2, relu3, relu4
            h = jnp.maximum(h, 0.0)
    return jax.nn.sigmoid(h)                    # sigmoid1


if __name__ == "__main__":
    key = jax.random.PRNGKey(0)
    key, kx = jax.random.split(key)

    batch = 8
    x = jax.random.normal(kx, (batch, 4), dtype=jnp.float32)

    params = init_params(jax.random.PRNGKey(0))

    out = fcnn4_forward(x, params)
    out = jax.block_until_ready(out)

    ref = reference_forward(x, params)
    assert out.shape == (batch, 1)
    # approx=True reciprocal (EUP) has ~2^-12 relative error -> loosen tolerance.
    assert jnp.allclose(out, ref, atol=1e-3, rtol=1e-3), "mismatch vs JAX reference"

    print("KERNEL_OK")
</pallas_src>

<mosaic_0001>
module attributes {stable_mosaic.version = 11 : i64} {
  func.func @_fcnn4_kernel(%arg0: i32, %arg1: memref<4x128xf32, #tpu.memory_space<vmem>>, %arg2: memref<128x4xf32, #tpu.memory_space<vmem>>, %arg3: memref<128x1xf32, #tpu.memory_space<vmem>>, %arg4: memref<64x128xf32, #tpu.memory_space<vmem>>, %arg5: memref<64x1xf32, #tpu.memory_space<vmem>>, %arg6: memref<32x64xf32, #tpu.memory_space<vmem>>, %arg7: memref<32x1xf32, #tpu.memory_space<vmem>>, %arg8: memref<16x32xf32, #tpu.memory_space<vmem>>, %arg9: memref<16x1xf32, #tpu.memory_space<vmem>>, %arg10: memref<1x16xf32, #tpu.memory_space<vmem>>, %arg11: memref<1x1xf32, #tpu.memory_space<vmem>>, %arg12: memref<1x128xf32, #tpu.memory_space<vmem>>) attributes {dimension_semantics = [#tpu.dimension_semantics<parallel>], iteration_bounds = array<i64: 1>, scalar_prefetch = 0 : i64, scratch_operands = 0 : i64, tpu.core_type = #tpu.core_type<tc>, window_params = [{transform_indices = @transform_0, window_bounds = array<i64: 4, 128>}, {pipeline_mode = #tpu.pipeline_mode<synchronous>, transform_indices = @transform_1, window_bounds = array<i64: 128, 4>}, {pipeline_mode = #tpu.pipeline_mode<synchronous>, transform_indices = @transform_2, window_bounds = array<i64: 128, 1>}, {pipeline_mode = #tpu.pipeline_mode<synchronous>, transform_indices = @transform_3, window_bounds = array<i64: 64, 128>}, {pipeline_mode = #tpu.pipeline_mode<synchronous>, transform_indices = @transform_4, window_bounds = array<i64: 64, 1>}, {pipeline_mode = #tpu.pipeline_mode<synchronous>, transform_indices = @transform_5, window_bounds = array<i64: 32, 64>}, {pipeline_mode = #tpu.pipeline_mode<synchronous>, transform_indices = @transform_6, window_bounds = array<i64: 32, 1>}, {pipeline_mode = #tpu.pipeline_mode<synchronous>, transform_indices = @transform_7, window_bounds = array<i64: 16, 32>}, {pipeline_mode = #tpu.pipeline_mode<synchronous>, transform_indices = @transform_8, window_bounds = array<i64: 16, 1>}, {pipeline_mode = #tpu.pipeline_mode<synchronous>, transform_indices = @transform_9, window_bounds = array<i64: 1, 16>}, {pipeline_mode = #tpu.pipeline_mode<synchronous>, transform_indices = @transform_10, window_bounds = array<i64: 1, 1>}, {transform_indices = @transform_11, window_bounds = array<i64: 1, 128>}]} {
    %c0 = arith.constant 0 : index
    %c0_0 = arith.constant 0 : index
    %0 = vector.load %arg1[%c0, %c0_0] : memref<4x128xf32, #tpu.memory_space<vmem>>, vector<4x128xf32>
    %c0_1 = arith.constant 0 : index
    %c0_2 = arith.constant 0 : index
    %1 = vector.load %arg2[%c0_1, %c0_2] : memref<128x4xf32, #tpu.memory_space<vmem>>, vector<128x4xf32>
    %cst = arith.constant dense<0.000000e+00> : vector<128x128xf32>
    %2 = tpu.matmul %1, %0, %cst {dimension_numbers = #tpu.dot_dimension_numbers<[1], [0], [0], [1], [0, 0, 1, 1], [], []>} : vector<128x4xf32>, vector<4x128xf32>, vector<128x128xf32> -> vector<128x128xf32>
    %c0_3 = arith.constant 0 : index
    %c0_4 = arith.constant 0 : index
    %3 = vector.load %arg3[%c0_3, %c0_4] : memref<128x1xf32, #tpu.memory_space<vmem>>, vector<128x1xf32>
    %4 = vector.broadcast %3 : vector<128x1xf32> to vector<128x128xf32>
    %5 = arith.addf %2, %4 : vector<128x128xf32>
    %c0_5 = arith.constant 0 : index
    %c0_6 = arith.constant 0 : index
    %6 = vector.load %arg4[%c0_5, %c0_6] : memref<64x128xf32, #tpu.memory_space<vmem>>, vector<64x128xf32>
    %cst_7 = arith.constant dense<0.000000e+00> : vector<64x128xf32>
    %7 = tpu.matmul %6, %5, %cst_7 {dimension_numbers = #tpu.dot_dimension_numbers<[1], [0], [0], [1], [0, 0, 1, 1], [], []>} : vector<64x128xf32>, vector<128x128xf32>, vector<64x128xf32> -> vector<64x128xf32>
    %c0_8 = arith.constant 0 : index
    %c0_9 = arith.constant 0 : index
    %8 = vector.load %arg5[%c0_8, %c0_9] : memref<64x1xf32, #tpu.memory_space<vmem>>, vector<64x1xf32>
    %9 = vector.broadcast %8 : vector<64x1xf32> to vector<64x128xf32>
    %10 = arith.addf %7, %9 : vector<64x128xf32>
    %cst_10 = arith.constant 0.000000e+00 : f32
    %11 = vector.broadcast %cst_10 : f32 to vector<64x128xf32>
    %12 = arith.maximumf %10, %11 : vector<64x128xf32>
    %c0_11 = arith.constant 0 : index
    %c0_12 = arith.constant 0 : index
    %13 = vector.load %arg6[%c0_11, %c0_12] : memref<32x64xf32, #tpu.memory_space<vmem>>, vector<32x64xf32>
    %cst_13 = arith.constant dense<0.000000e+00> : vector<32x128xf32>
    %14 = tpu.matmul %13, %12, %cst_13 {dimension_numbers = #tpu.dot_dimension_numbers<[1], [0], [0], [1], [0, 0, 1, 1], [], []>} : vector<32x64xf32>, vector<64x128xf32>, vector<32x128xf32> -> vector<32x128xf32>
    %c0_14 = arith.constant 0 : index
    %c0_15 = arith.constant 0 : index
    %15 = vector.load %arg7[%c0_14, %c0_15] : memref<32x1xf32, #tpu.memory_space<vmem>>, vector<32x1xf32>
    %16 = vector.broadcast %15 : vector<32x1xf32> to vector<32x128xf32>
    %17 = arith.addf %14, %16 : vector<32x128xf32>
    %cst_16 = arith.constant 0.000000e+00 : f32
    %18 = vector.broadcast %cst_16 : f32 to vector<32x128xf32>
    %19 = arith.maximumf %17, %18 : vector<32x128xf32>
    %c0_17 = arith.constant 0 : index
    %c0_18 = arith.constant 0 : index
    %20 = vector.load %arg8[%c0_17, %c0_18] : memref<16x32xf32, #tpu.memory_space<vmem>>, vector<16x32xf32>
    %cst_19 = arith.constant dense<0.000000e+00> : vector<16x128xf32>
    %21 = tpu.matmul %20, %19, %cst_19 {dimension_numbers = #tpu.dot_dimension_numbers<[1], [0], [0], [1], [0, 0, 1, 1], [], []>} : vector<16x32xf32>, vector<32x128xf32>, vector<16x128xf32> -> vector<16x128xf32>
    %c0_20 = arith.constant 0 : index
    %c0_21 = arith.constant 0 : index
    %22 = vector.load %arg9[%c0_20, %c0_21] : memref<16x1xf32, #tpu.memory_space<vmem>>, vector<16x1xf32>
    %23 = vector.broadcast %22 : vector<16x1xf32> to vector<16x128xf32>
    %24 = arith.addf %21, %23 : vector<16x128xf32>
    %cst_22 = arith.constant 0.000000e+00 : f32
    %25 = vector.broadcast %cst_22 : f32 to vector<16x128xf32>
    %26 = arith.maximumf %24, %25 : vector<16x128xf32>
    %c0_23 = arith.constant 0 : index
    %c0_24 = arith.constant 0 : index
    %27 = vector.load %arg10[%c0_23, %c0_24] : memref<1x16xf32, #tpu.memory_space<vmem>>, vector<1x16xf32>
    %cst_25 = arith.constant dense<0.000000e+00> : vector<1x128xf32>
    %28 = tpu.matmul %27, %26, %cst_25 {dimension_numbers = #tpu.dot_dimension_numbers<[1], [0], [0], [1], [0, 0, 1, 1], [], []>} : vector<1x16xf32>, vector<16x128xf32>, vector<1x128xf32> -> vector<1x128xf32>
    %c0_26 = arith.constant 0 : index
    %c0_27 = arith.constant 0 : index
    %29 = vector.load %arg11[%c0_26, %c0_27] : memref<1x1xf32, #tpu.memory_space<vmem>>, vector<1x1xf32>
    %30 = vector.broadcast %29 : vector<1x1xf32> to vector<1x128xf32>
    %31 = arith.addf %28, %30 : vector<1x128xf32>
    %cst_28 = arith.constant 0.000000e+00 : f32
    %32 = vector.broadcast %cst_28 : f32 to vector<1x128xf32>
    %33 = arith.subf %32, %31 : vector<1x128xf32>
    %34 = math.exp %33 : vector<1x128xf32>
    %cst_29 = arith.constant 1.000000e+00 : f32
    %35 = vector.broadcast %cst_29 : f32 to vector<1x128xf32>
    %36 = arith.addf %35, %34 : vector<1x128xf32>
    %37 = tpu.reciprocal %36 {approx = true} : vector<1x128xf32> -> vector<1x128xf32>
    %c0_30 = arith.constant 0 : index
    %c0_31 = arith.constant 0 : index
    %38 = vector.load %arg12[%c0_30, %c0_31] : memref<1x128xf32, #tpu.memory_space<vmem>>, vector<1x128xf32>
    tpu.vector_store %arg12[%c0_30, %c0_31], %37 {strides = array<i32>} : memref<1x128xf32, #tpu.memory_space<vmem>>, vector<1x128xf32>,
    return
  }
  func.func @transform_0(%arg0: i32) -> (i32, i32) {
    %c0_i32 = arith.constant 0 : i32
    %c0_i32_0 = arith.constant 0 : i32
    return %c0_i32, %arg0 : i32, i32
  }
  func.func @transform_1(%arg0: i32) -> (i32, i32) {
    %c0_i32 = arith.constant 0 : i32
    %c0_i32_0 = arith.constant 0 : i32
    %c0_i32_1 = arith.constant 0 : i32
    return %c0_i32, %c0_i32_0 : i32, i32
  }
  func.func @transform_2(%arg0: i32) -> (i32, i32) {
    %c0_i32 = arith.constant 0 : i32
    %c0_i32_0 = arith.constant 0 : i32
    %c0_i32_1 = arith.constant 0 : i32
    return %c0_i32, %c0_i32_0 : i32, i32
  }
  func.func @transform_3(%arg0: i32) -> (i32, i32) {
    %c0_i32 = arith.constant 0 : i32
    %c0_i32_0 = arith.constant 0 : i32
    %c0_i32_1 = arith.constant 0 : i32
    return %c0_i32, %c0_i32_0 : i32, i32
  }
  func.func @transform_4(%arg0: i32) -> (i32, i32) {
    %c0_i32 = arith.constant 0 : i32
    %c0_i32_0 = arith.constant 0 : i32
    %c0_i32_1 = arith.constant 0 : i32
    return %c0_i32, %c0_i32_0 : i32, i32
  }
  func.func @transform_5(%arg0: i32) -> (i32, i32) {
    %c0_i32 = arith.constant 0 : i32
    %c0_i32_0 = arith.constant 0 : i32
    %c0_i32_1 = arith.constant 0 : i32
    return %c0_i32, %c0_i32_0 : i32, i32
  }
  func.func @transform_6(%arg0: i32) -> (i32, i32) {
    %c0_i32 = arith.constant 0 : i32
    %c0_i32_0 = arith.constant 0 : i32
    %c0_i32_1 = arith.constant 0 : i32
    return %c0_i32, %c0_i32_0 : i32, i32
  }
  func.func @transform_7(%arg0: i32) -> (i32, i32) {
    %c0_i32 = arith.constant 0 : i32
    %c0_i32_0 = arith.constant 0 : i32
    %c0_i32_1 = arith.constant 0 : i32
    return %c0_i32, %c0_i32_0 : i32, i32
  }
  func.func @transform_8(%arg0: i32) -> (i32, i32) {
    %c0_i32 = arith.constant 0 : i32
    %c0_i32_0 = arith.constant 0 : i32
    %c0_i32_1 = arith.constant 0 : i32
    return %c0_i32, %c0_i32_0 : i32, i32
  }
  func.func @transform_9(%arg0: i32) -> (i32, i32) {
    %c0_i32 = arith.constant 0 : i32
    %c0_i32_0 = arith.constant 0 : i32
    %c0_i32_1 = arith.constant 0 : i32
    return %c0_i32, %c0_i32_0 : i32, i32
  }
  func.func @transform_10(%arg0: i32) -> (i32, i32) {
    %c0_i32 = arith.constant 0 : i32
    %c0_i32_0 = arith.constant 0 : i32
    %c0_i32_1 = arith.constant 0 : i32
    return %c0_i32, %c0_i32_0 : i32, i32
  }
  func.func @transform_11(%arg0: i32) -> (i32, i32) {
    %c0_i32 = arith.constant 0 : i32
    %c0_i32_0 = arith.constant 0 : i32
    return %c0_i32, %arg0 : i32, i32
  }
}

</mosaic_0001>

<llo_original>
// kernel: tpu_custom_call.1
$region0: #{tpu_custom_call.1}
  #allocation0 [shape = 'u32[]', space=smem, size = 0x4, offset = 0x4, fixed_abs, tag = 'smem constant byte address 0x4 - core index']
  #allocation1 [shape = 'u32[144,128]{1,0:T(1,128)}', space=vmem, size = 0x12000, scoped, tag = 'internal scratch']
  #allocation2 [shape = 'f32[1,1]{1,0:T(1,128)S(1)}', space=vmem, size = 0x200, scoped, tag = 'scoped memory for tpu_custom_call.1']
  %s0 = inlined_call_operand.vmem [shape: f32[4,128], index: 0, kind: input, shape index: {}]
  %s1 = inlined_call_operand.vmem [shape: f32[128,4], index: 1, kind: input, shape index: {}]
  %s2 = inlined_call_operand.vmem [shape: f32[128,1], index: 2, kind: input, shape index: {}]
  %s3 = inlined_call_operand.vmem [shape: f32[64,128], index: 3, kind: input, shape index: {}]
  %s4 = inlined_call_operand.vmem [shape: f32[64,1], index: 4, kind: input, shape index: {}]
  %s5 = inlined_call_operand.vmem [shape: f32[32,64], index: 5, kind: input, shape index: {}]
  %s6 = inlined_call_operand.vmem [shape: f32[32,1], index: 6, kind: input, shape index: {}]
  %s7 = inlined_call_operand.vmem [shape: f32[16,32], index: 7, kind: input, shape index: {}]
  %s8 = inlined_call_operand.vmem [shape: f32[16,1], index: 8, kind: input, shape index: {}]
  %s9 = inlined_call_operand.vmem [shape: f32[1,16], index: 9, kind: input, shape index: {}]
  %s10 = inlined_call_operand.<no memory space> [shape: f32[1,1], index: 10, kind: input, shape index: {}]
  %s11 = inlined_call_operand.hbm [shape: f32[1,128], index: 11, kind: output, shape index: {}]
  %s12 = sld [smem:[#allocation0]]
  $region54: #{tpu_custom_call.1} parent=0
    _
  %s14 = ssub.s32 1, %s12
  %s15 = scalar_select 0, %s14, %s12
  %v16 = vstv %s10
  %17 = vst [vmem:[#allocation2] sm:$0x1] %v16
  $region1: #{tpu_custom_call.1} parent=0
    #allocation3 [shape = 'u8[512]{0}', space=vmem, size = 0x400, scoped, tag = 'output window, operand 0, single buffered']
    #allocation4 [shape = 's32[1]{0}', space=sflag, size = 0x4, scoped, tag = 'scoped memory for tpu_custom_call.1']
    %18 = vsyncpa [#allocation4], 0
    // Predicated region
    $region2: #{tpu_custom_call.1} parent=1 // pred_check
      _
    $region3: #{tpu_custom_call.1} parent=1 // pred_check_branch
      %20 = sbr.rel (0) target = $region5
    $region4: #{tpu_custom_call.1} parent=1 // pred_region
      _
    $region5: #{tpu_custom_call.1} parent=1 // pred_fallthru
      _
    // Predicated region
    $region6: #{tpu_custom_call.1} parent=1 // pred_check
      _
    $region7: #{tpu_custom_call.1} parent=1 // pred_check_branch
      %22 = sbr.rel (0) target = $region9
    $region8: #{tpu_custom_call.1} parent=1 // pred_region
      _
    $region9: #{tpu_custom_call.1} parent=1 // pred_fallthru
      _
    // Predicated region
    $region10: #{tpu_custom_call.1} parent=1 // pred_check
      _
    $region11: #{tpu_custom_call.1} parent=1 // pred_check_branch
      %24 = sbr.rel (0) target = $region13
    $region12: #{tpu_custom_call.1} parent=1 // pred_region
      _
    $region13: #{tpu_custom_call.1} parent=1 // pred_fallthru
      _
    // Predicated region
    $region14: #{tpu_custom_call.1} parent=1 // pred_check
      _
    $region15: #{tpu_custom_call.1} parent=1 // pred_check_branch
      %26 = sbr.rel (0) target = $region17
    $region16: #{tpu_custom_call.1} parent=1 // pred_region
      _
    $region17: #{tpu_custom_call.1} parent=1 // pred_fallthru
      _
    // Predicated region
    $region18: #{tpu_custom_call.1} parent=1 // pred_check
      _
    $region19: #{tpu_custom_call.1} parent=1 // pred_check_branch
      %28 = sbr.rel (0) target = $region21
    $region20: #{tpu_custom_call.1} parent=1 // pred_region
      _
    $region21: #{tpu_custom_call.1} parent=1 // pred_fallthru
      _
    // Predicated region
    $region22: #{tpu_custom_call.1} parent=1 // pred_check
      _
    $region23: #{tpu_custom_call.1} parent=1 // pred_check_branch
      %30 = sbr.rel (0) target = $region25
    $region24: #{tpu_custom_call.1} parent=1 // pred_region
      _
    $region25: #{tpu_custom_call.1} parent=1 // pred_fallthru
      _
    // Predicated region
    $region26: #{tpu_custom_call.1} parent=1 // pred_check
      _
    $region27: #{tpu_custom_call.1} parent=1 // pred_check_branch
      %32 = sbr.rel (0) target = $region29
    $region28: #{tpu_custom_call.1} parent=1 // pred_region
      _
    $region29: #{tpu_custom_call.1} parent=1 // pred_fallthru
      _
    // Predicated region
    $region30: #{tpu_custom_call.1} parent=1 // pred_check
      _
    $region31: #{tpu_custom_call.1} parent=1 // pred_check_branch
      %34 = sbr.rel (0) target = $region33
    $region32: #{tpu_custom_call.1} parent=1 // pred_region
      _
    $region33: #{tpu_custom_call.1} parent=1 // pred_fallthru
      _
    // Predicated region
    $region34: #{tpu_custom_call.1} parent=1 // pred_check
      _
    $region35: #{tpu_custom_call.1} parent=1 // pred_check_branch
      %36 = sbr.rel (0) target = $region37
    $region36: #{tpu_custom_call.1} parent=1 // pred_region
      _
    $region37: #{tpu_custom_call.1} parent=1 // pred_fallthru
      _
    // Predicated region
    $region38: #{tpu_custom_call.1} parent=1 // pred_check
      _
    $region39: #{tpu_custom_call.1} parent=1 // pred_check_branch
      %38 = sbr.rel (0) target = $region41
    $region40: #{tpu_custom_call.1} parent=1 // pred_region
      _
    $region41: #{tpu_custom_call.1} parent=1 // pred_fallthru
      _
    // Predicated region
    $region42: #{tpu_custom_call.1} parent=1 // pred_check
      _
    $region43: #{tpu_custom_call.1} parent=1 // pred_check_branch
      %40 = sbr.rel (0) target = $region45
    $region44: #{tpu_custom_call.1} parent=1 // pred_region
      _
    $region45: #{tpu_custom_call.1} parent=1 // pred_fallthru
      _
    %v41 = vld [vmem:[%s0] sm:$0xf]
    %v42 = vld [vmem:[%s1] sm:$0xff]
    %v43 = vld [vmem:[%s1 + $0x8] sm:$0xff]
    %v44 = vld [vmem:[%s1 + $0x10] sm:$0xff]
    %v45 = vld [vmem:[%s1 + $0x18] sm:$0xff]
    %v46 = vld [vmem:[%s1 + $0x20] sm:$0xff]
    %v47 = vld [vmem:[%s1 + $0x28] sm:$0xff]
    %v48 = vld [vmem:[%s1 + $0x30] sm:$0xff]
    %v49 = vld [vmem:[%s1 + $0x38] sm:$0xff]
    %v50 = vld [vmem:[%s1 + $0x40] sm:$0xff]
    %v51 = vld [vmem:[%s1 + $0x48] sm:$0xff]
    %v52 = vld [vmem:[%s1 + $0x50] sm:$0xff]
    %v53 = vld [vmem:[%s1 + $0x58] sm:$0xff]
    %v54 = vld [vmem:[%s1 + $0x60] sm:$0xff]
    %v55 = vld [vmem:[%s1 + $0x68] sm:$0xff]
    %v56 = vld [vmem:[%s1 + $0x70] sm:$0xff]
    %v57 = vld [vmem:[%s1 + $0x78] sm:$0xff]
    %v58 = vld [vmem:[%s2] sm:$0xff]
    %v59 = vld [vmem:[%s2 + $0x8] sm:$0xff]
    %v60 = vld [vmem:[%s2 + $0x10] sm:$0xff]
    %v61 = vld [vmem:[%s2 + $0x18] sm:$0xff]
    %v62 = vld [vmem:[%s2 + $0x20] sm:$0xff]
    %v63 = vld [vmem:[%s2 + $0x28] sm:$0xff]
    %v64 = vld [vmem:[%s2 + $0x30] sm:$0xff]
    %v65 = vld [vmem:[%s2 + $0x38] sm:$0xff]
    %v66 = vld [vmem:[%s2 + $0x40] sm:$0xff]
    %v67 = vld [vmem:[%s2 + $0x48] sm:$0xff]
    %v68 = vld [vmem:[%s2 + $0x50] sm:$0xff]
    %v69 = vld [vmem:[%s2 + $0x58] sm:$0xff]
    %v70 = vld [vmem:[%s2 + $0x60] sm:$0xff]
    %v71 = vld [vmem:[%s2 + $0x68] sm:$0xff]
    %v72 = vld [vmem:[%s2 + $0x70] sm:$0xff]
    %v73 = vld [vmem:[%s2 + $0x78] sm:$0xff]
    %75 = vset.pattern.permute.xlu0 0
    %76 = vperm.xlu0 %75, %v58
    %v77 = vpop.permute.xlu0 %76
    %80 = vset.pattern.permute.xlu0 0
    %81 = vperm.xlu0 %80, %v59
    %v82 = vpop.permute.xlu0 %81
    %85 = vset.pattern.permute.xlu0 0
    %86 = vperm.xlu0 %85, %v60
    %v87 = vpop.permute.xlu0 %86
    %90 = vset.pattern.permute.xlu0 0
    %91 = vperm.xlu0 %90, %v61
    %v92 = vpop.permute.xlu0 %91
    %95 = vset.pattern.permute.xlu0 0
    %96 = vperm.xlu0 %95, %v62
    %v97 = vpop.permute.xlu0 %96
    %100 = vset.pattern.permute.xlu0 0
    %101 = vperm.xlu0 %100, %v63
    %v102 = vpop.permute.xlu0 %101
    %105 = vset.pattern.permute.xlu0 0
    %106 = vperm.xlu0 %105, %v64
    %v107 = vpop.permute.xlu0 %106
    %110 = vset.pattern.permute.xlu0 0
    %111 = vperm.xlu0 %110, %v65
    %v112 = vpop.permute.xlu0 %111
    %115 = vset.pattern.permute.xlu0 0
    %116 = vperm.xlu0 %115, %v66
    %v117 = vpop.permute.xlu0 %116
    %120 = vset.pattern.permute.xlu0 0
    %121 = vperm.xlu0 %120, %v67
    %v122 = vpop.permute.xlu0 %121
    %125 = vset.pattern.permute.xlu0 0
    %126 = vperm.xlu0 %125, %v68
    %v127 = vpop.permute.xlu0 %126
    %130 = vset.pattern.permute.xlu0 0
    %131 = vperm.xlu0 %130, %v69
    %v132 = vpop.permute.xlu0 %131
    %135 = vset.pattern.permute.xlu0 0
    %136 = vperm.xlu0 %135, %v70
    %v137 = vpop.permute.xlu0 %136
    %140 = vset.pattern.permute.xlu0 0
    %141 = vperm.xlu0 %140, %v71
    %v142 = vpop.permute.xlu0 %141
    %145 = vset.pattern.permute.xlu0 0
    %146 = vperm.xlu0 %145, %v72
    %v147 = vpop.permute.xlu0 %146
    %150 = vset.pattern.permute.xlu0 0
    %151 = vperm.xlu0 %150, %v73
    %v152 = vpop.permute.xlu0 %151
    %vm154 = vcmask 31744
    %v156 = vsel %vm154, %v42, 0
    %v159 = vsel %vm154, %v43, 0
    %v162 = vsel %vm154, %v44, 0
    %v165 = vsel %vm154, %v45, 0
    %v168 = vsel %vm154, %v46, 0
    %v171 = vsel %vm154, %v47, 0
    %v174 = vsel %vm154, %v48, 0
    %v177 = vsel %vm154, %v49, 0
    %v180 = vsel %vm154, %v50, 0
    %v183 = vsel %vm154, %v51, 0
    %v186 = vsel %vm154, %v52, 0
    %v189 = vsel %vm154, %v53, 0
    %v192 = vsel %vm154, %v54, 0
    %v195 = vsel %vm154, %v55, 0
    %v198 = vsel %vm154, %v56, 0
    %v201 = vsel %vm154, %v57, 0
    %vm203 = vcmask 1043456
    %v205 = vsel %vm203, %v41, 0
    %207 = vmatprep.subr.mxu0 0.0
    %208 = vmatpush1.msra.mxu0 %v205
    %209 = vmatprep.subr.mxu0 0.0
    %210 = vmatpush1.msra.mxu0 0.0
    %211 = vmatprep.subr.mxu0 0.0
    %212 = vmatpush1.msra.mxu0 0.0
    %213 = vmatprep.subr.mxu0 0.0
    %214 = vmatpush1.msra.mxu0 0.0
    %215 = vmatprep.subr.mxu0 0.0
    %216 = vmatpush1.msra.mxu0 0.0
    %217 = vmatprep.subr.mxu0 0.0
    %218 = vmatpush1.msra.mxu0 0.0
    %219 = vmatprep.subr.mxu0 0.0
    %220 = vmatpush1.msra.mxu0 0.0
    %221 = vmatprep.subr.mxu0 0.0
    %222 = vmatpush1.msra.mxu0 0.0
    %223 = vmatprep.subr.mxu0 0.0
    %224 = vmatpush1.msra.mxu0 0.0
    %225 = vmatprep.subr.mxu0 0.0
    %226 = vmatpush1.msra.mxu0 0.0
    %227 = vmatprep.subr.mxu0 0.0
    %228 = vmatpush1.msra.mxu0 0.0
    %229 = vmatprep.subr.mxu0 0.0
    %230 = vmatpush1.msra.mxu0 0.0
    %231 = vmatprep.subr.mxu0 0.0
    %232 = vmatpush1.msra.mxu0 0.0
    %233 = vmatprep.subr.mxu0 0.0
    %234 = vmatpush1.msra.mxu0 0.0
    %235 = vmatprep.subr.mxu0 0.0
    %236 = vmatpush1.msra.mxu0 0.0
    %237 = vmatprep.subr.mxu0 0.0
    %238 = vmatpush1.msra.mxu0 0.0
    %239 = vmatprep.subr.mxu0 0.0
    %240 = vmatpush1.msra.mxu0 0.0
    %241 = vmatprep.subr.mxu0 0.0
    %242 = vmatpush1.msra.mxu0 0.0
    %243 = vmatprep.subr.mxu0 0.0
    %244 = vmatpush1.msra.mxu0 0.0
    %245 = vmatprep.subr.mxu0 0.0
    %246 = vmatpush1.msra.mxu0 0.0
    %247 = vmatprep.subr.mxu0 0.0
    %248 = vmatpush1.msra.mxu0 0.0
    %249 = vmatprep.subr.mxu0 0.0
    %250 = vmatpush1.msra.mxu0 0.0
    %251 = vmatprep.subr.mxu0 0.0
    %252 = vmatpush1.msra.mxu0 0.0
    %253 = vmatprep.subr.mxu0 0.0
    %254 = vmatpush1.msra.mxu0 0.0
    %255 = vmatprep.subr.mxu0 0.0
    %256 = vmatpush1.msra.mxu0 0.0
    %257 = vmatprep.subr.mxu0 0.0
    %258 = vmatpush1.msra.mxu0 0.0
    %259 = vmatprep.subr.mxu0 0.0
    %260 = vmatpush1.msra.mxu0 0.0
    %261 = vmatprep.subr.mxu0 0.0
    %262 = vmatpush1.msra.mxu0 0.0
    %263 = vmatprep.subr.mxu0 0.0
    %264 = vmatpush1.msra.mxu0 0.0
    %265 = vmatprep.subr.mxu0 0.0
    %266 = vmatpush1.msra.mxu0 0.0
    %267 = vmatprep.subr.mxu0 0.0
    %268 = vmatpush1.msra.mxu0 0.0
    %269 = vmatprep.subr.mxu0 0.0
    %270 = vmatpush1.msra.mxu0 0.0
    %271 = vmatprep.mubr.f32.mxu0 0.0
    %272 = vmatmul.mubr.f32.gmra.mrb[0].mxu0 %v156
    %v273 = vpop.f32.mrb[0].mxu0
    %v274 = vadd.f32 %v77, %v273
    %v275 = vpop.f32.mrb[0].mxu0
    %276 = vmatprep.mubr.f32.mxu0 0.0
    %277 = vmatmul.mubr.f32.gmra.mrb[0].mxu0 %v159
    %v278 = vpop.f32.mrb[0].mxu0
    %v279 = vadd.f32 %v82, %v278
    %v280 = vpop.f32.mrb[0].mxu0
    %281 = vmatprep.mubr.f32.mxu0 0.0
    %282 = vmatmul.mubr.f32.gmra.mrb[0].mxu0 %v162
    %v283 = vpop.f32.mrb[0].mxu0
    %v284 = vadd.f32 %v87, %v283
    %v285 = vpop.f32.mrb[0].mxu0
    %286 = vmatprep.mubr.f32.mxu0 0.0
    %287 = vmatmul.mubr.f32.gmra.mrb[0].mxu0 %v165
    %v288 = vpop.f32.mrb[0].mxu0
    %v289 = vadd.f32 %v92, %v288
    %v290 = vpop.f32.mrb[0].mxu0
    %291 = vmatprep.mubr.f32.mxu0 0.0
    %292 = vmatmul.mubr.f32.gmra.mrb[0].mxu0 %v168
    %v293 = vpop.f32.mrb[0].mxu0
    %v294 = vadd.f32 %v97, %v293
    %v295 = vpop.f32.mrb[0].mxu0
    %296 = vmatprep.mubr.f32.mxu0 0.0
    %297 = vmatmul.mubr.f32.gmra.mrb[0].mxu0 %v171
    %v298 = vpop.f32.mrb[0].mxu0
    %v299 = vadd.f32 %v102, %v298
    %v300 = vpop.f32.mrb[0].mxu0
    %301 = vmatprep.mubr.f32.mxu0 0.0
    %302 = vmatmul.mubr.f32.gmra.mrb[0].mxu0 %v174
    %v303 = vpop.f32.mrb[0].mxu0
    %v304 = vadd.f32 %v107, %v303
    %v305 = vpop.f32.mrb[0].mxu0
    %306 = vmatprep.mubr.f32.mxu0 0.0
    %307 = vmatmul.mubr.f32.gmra.mrb[0].mxu0 %v177
    %v308 = vpop.f32.mrb[0].mxu0
    %v309 = vadd.f32 %v112, %v308
    %v310 = vpop.f32.mrb[0].mxu0
    %311 = vmatprep.mubr.f32.mxu0 0.0
    %312 = vmatmul.mubr.f32.gmra.mrb[0].mxu0 %v180
    %v313 = vpop.f32.mrb[0].mxu0
    %v314 = vadd.f32 %v117, %v313
    %v315 = vpop.f32.mrb[0].mxu0
    %316 = vmatprep.mubr.f32.mxu0 0.0
    %317 = vmatmul.mubr.f32.gmra.mrb[0].mxu0 %v183
    %v318 = vpop.f32.mrb[0].mxu0
    %v319 = vadd.f32 %v122, %v318
    %v320 = vpop.f32.mrb[0].mxu0
    %321 = vmatprep.mubr.f32.mxu0 0.0
    %322 = vmatmul.mubr.f32.gmra.mrb[0].mxu0 %v186
    %v323 = vpop.f32.mrb[0].mxu0
    %v324 = vadd.f32 %v127, %v323
    %v325 = vpop.f32.mrb[0].mxu0
    %326 = vmatprep.mubr.f32.mxu0 0.0
    %327 = vmatmul.mubr.f32.gmra.mrb[0].mxu0 %v189
    %v328 = vpop.f32.mrb[0].mxu0
    %v329 = vadd.f32 %v132, %v328
    %v330 = vpop.f32.mrb[0].mxu0
    %331 = vmatprep.mubr.f32.mxu0 0.0
    %332 = vmatmul.mubr.f32.gmra.mrb[0].mxu0 %v192
    %v333 = vpop.f32.mrb[0].mxu0
    %v334 = vadd.f32 %v137, %v333
    %v335 = vpop.f32.mrb[0].mxu0
    %336 = vmatprep.mubr.f32.mxu0 0.0
    %337 = vmatmul.mubr.f32.gmra.mrb[0].mxu0 %v195
    %v338 = vpop.f32.mrb[0].mxu0
    %v339 = vadd.f32 %v142, %v338
    %v340 = vpop.f32.mrb[0].mxu0
    %341 = vmatprep.mubr.f32.mxu0 0.0
    %342 = vmatmul.mubr.f32.gmra.mrb[0].mxu0 %v198
    %v343 = vpop.f32.mrb[0].mxu0
    %v344 = vadd.f32 %v147, %v343
    %v345 = vpop.f32.mrb[0].mxu0
    %346 = vmatprep.mubr.f32.mxu0 0.0
    %347 = vmatmul.mubr.f32.gmra.mrb[0].mxu0 %v201
    %v348 = vpop.f32.mrb[0].mxu0
    %v349 = vadd.f32 %v152, %v348
    %v350 = vpop.f32.mrb[0].mxu0
    %351 = vdwg.mxu0
    %v352 = vld [vmem:[%s3] sm:$0xff]
    %v353 = vld [vmem:[%s3 + $0x8] sm:$0xff]
    %v354 = vld [vmem:[%s3 + $0x10] sm:$0xff]
    %v355 = vld [vmem:[%s3 + $0x18] sm:$0xff]
    %v356 = vld [vmem:[%s3 + $0x20] sm:$0xff]
    %v357 = vld [vmem:[%s3 + $0x28] sm:$0xff]
    %v358 = vld [vmem:[%s3 + $0x30] sm:$0xff]
    %v359 = vld [vmem:[%s3 + $0x38] sm:$0xff]
    %v360 = vld [vmem:[%s4] sm:$0xff]
    %v361 = vld [vmem:[%s4 + $0x8] sm:$0xff]
    %v362 = vld [vmem:[%s4 + $0x10] sm:$0xff]
    %v363 = vld [vmem:[%s4 + $0x18] sm:$0xff]
    %v364 = vld [vmem:[%s4 + $0x20] sm:$0xff]
    %v365 = vld [vmem:[%s4 + $0x28] sm:$0xff]
    %v366 = vld [vmem:[%s4 + $0x30] sm:$0xff]
    %v367 = vld [vmem:[%s4 + $0x38] sm:$0xff]
    %369 = vset.pattern.permute.xlu0 0
    %370 = vperm.xlu0 %369, %v360
    %v371 = vpop.permute.xlu0 %370
    %374 = vset.pattern.permute.xlu0 0
    %375 = vperm.xlu0 %374, %v361
    %v376 = vpop.permute.xlu0 %375
    %379 = vset.pattern.permute.xlu0 0
    %380 = vperm.xlu0 %379, %v362
    %v381 = vpop.permute.xlu0 %380
    %384 = vset.pattern.permute.xlu0 0
    %385 = vperm.xlu0 %384, %v363
    %v386 = vpop.permute.xlu0 %385
    %389 = vset.pattern.permute.xlu0 0
    %390 = vperm.xlu0 %389, %v364
    %v391 = vpop.permute.xlu0 %390
    %394 = vset.pattern.permute.xlu0 0
    %395 = vperm.xlu0 %394, %v365
    %v396 = vpop.permute.xlu0 %395
    %399 = vset.pattern.permute.xlu0 0
    %400 = vperm.xlu0 %399, %v366
    %v401 = vpop.permute.xlu0 %400
    %404 = vset.pattern.permute.xlu0 0
    %405 = vperm.xlu0 %404, %v367
    %v406 = vpop.permute.xlu0 %405
    %408 = vmatprep.subr.mxu0 0.0
    %409 = vmatpush1.msra.mxu0 %v274
    %410 = vmatprep.subr.mxu0 0.0
    %411 = vmatpush1.msra.mxu0 %v279
    %412 = vmatprep.subr.mxu0 0.0
    %413 = vmatpush1.msra.mxu0 %v284
    %414 = vmatprep.subr.mxu0 0.0
    %415 = vmatpush1.msra.mxu0 %v289
    %416 = vmatprep.subr.mxu0 0.0
    %417 = vmatpush1.msra.mxu0 %v294
    %418 = vmatprep.subr.mxu0 0.0
    %419 = vmatpush1.msra.mxu0 %v299
    %420 = vmatprep.subr.mxu0 0.0
    %421 = vmatpush1.msra.mxu0 %v304
    %422 = vmatprep.subr.mxu0 0.0
    %423 = vmatpush1.msra.mxu0 %v309
    %424 = vmatprep.subr.mxu0 0.0
    %425 = vmatpush1.msra.mxu0 %v314
    %426 = vmatprep.subr.mxu0 0.0
    %427 = vmatpush1.msra.mxu0 %v319
    %428 = vmatprep.subr.mxu0 0.0
    %429 = vmatpush1.msra.mxu0 %v324
    %430 = vmatprep.subr.mxu0 0.0
    %431 = vmatpush1.msra.mxu0 %v329
    %432 = vmatprep.subr.mxu0 0.0
    %433 = vmatpush1.msra.mxu0 %v334
    %434 = vmatprep.subr.mxu0 0.0
    %435 = vmatpush1.msra.mxu0 %v339
    %436 = vmatprep.subr.mxu0 0.0
    %437 = vmatpush1.msra.mxu0 %v344
    %438 = vmatprep.subr.mxu0 0.0
    %439 = vmatpush1.msra.mxu0 %v349
    %440 = vmatprep.subr.mxu0 0.0
    %441 = vmatpush1.msra.mxu0 0.0
    %442 = vmatprep.subr.mxu0 0.0
    %443 = vmatpush1.msra.mxu0 0.0
    %444 = vmatprep.subr.mxu0 0.0
    %445 = vmatpush1.msra.mxu0 0.0
    %446 = vmatprep.subr.mxu0 0.0
    %447 = vmatpush1.msra.mxu0 0.0
    %448 = vmatprep.subr.mxu0 0.0
    %449 = vmatpush1.msra.mxu0 0.0
    %450 = vmatprep.subr.mxu0 0.0
    %451 = vmatpush1.msra.mxu0 0.0
    %452 = vmatprep.subr.mxu0 0.0
    %453 = vmatpush1.msra.mxu0 0.0
    %454 = vmatprep.subr.mxu0 0.0
    %455 = vmatpush1.msra.mxu0 0.0
    %456 = vmatprep.subr.mxu0 0.0
    %457 = vmatpush1.msra.mxu0 0.0
    %458 = vmatprep.subr.mxu0 0.0
    %459 = vmatpush1.msra.mxu0 0.0
    %460 = vmatprep.subr.mxu0 0.0
    %461 = vmatpush1.msra.mxu0 0.0
    %462 = vmatprep.subr.mxu0 0.0
    %463 = vmatpush1.msra.mxu0 0.0
    %464 = vmatprep.subr.mxu0 0.0
    %465 = vmatpush1.msra.mxu0 0.0
    %466 = vmatprep.subr.mxu0 0.0
    %467 = vmatpush1.msra.mxu0 0.0
    %468 = vmatprep.subr.mxu0 0.0
    %469 = vmatpush1.msra.mxu0 0.0
    %470 = vmatprep.subr.mxu0 0.0
    %471 = vmatpush1.msra.mxu0 0.0
    %472 = vmatprep.mubr.f32.mxu0 0.0
    %473 = vmatmul.mubr.f32.gmra.mrb[0].mxu0 %v352
    %v474 = vpop.f32.mrb[0].mxu0
    %v475 = vadd.f32 %v371, %v474
    %v476 = vpop.f32.mrb[0].mxu0
    %477 = vmatprep.mubr.f32.mxu0 0.0
    %478 = vmatmul.mubr.f32.gmra.mrb[0].mxu0 %v353
    %v479 = vpop.f32.mrb[0].mxu0
    %v480 = vadd.f32 %v376, %v479
    %v481 = vpop.f32.mrb[0].mxu0
    %482 = vmatprep.mubr.f32.mxu0 0.0
    %483 = vmatmul.mubr.f32.gmra.mrb[0].mxu0 %v354
    %v484 = vpop.f32.mrb[0].mxu0
    %v485 = vadd.f32 %v381, %v484
    %v486 = vpop.f32.mrb[0].mxu0
    %487 = vmatprep.mubr.f32.mxu0 0.0
    %488 = vmatmul.mubr.f32.gmra.mrb[0].mxu0 %v355
    %v489 = vpop.f32.mrb[0].mxu0
    %v490 = vadd.f32 %v386, %v489
    %v491 = vpop.f32.mrb[0].mxu0
    %492 = vmatprep.mubr.f32.mxu0 0.0
    %493 = vmatmul.mubr.f32.gmra.mrb[0].mxu0 %v356
    %v494 = vpop.f32.mrb[0].mxu0
    %v495 = vadd.f32 %v391, %v494
    %v496 = vpop.f32.mrb[0].mxu0
    %497 = vmatprep.mubr.f32.mxu0 0.0
    %498 = vmatmul.mubr.f32.gmra.mrb[0].mxu0 %v357
    %v499 = vpop.f32.mrb[0].mxu0
    %v500 = vadd.f32 %v396, %v499
    %v501 = vpop.f32.mrb[0].mxu0
    %502 = vmatprep.mubr.f32.mxu0 0.0
    %503 = vmatmul.mubr.f32.gmra.mrb[0].mxu0 %v358
    %v504 = vpop.f32.mrb[0].mxu0
    %v505 = vadd.f32 %v401, %v504
    %v506 = vpop.f32.mrb[0].mxu0
    %507 = vmatprep.mubr.f32.mxu0 0.0
    %508 = vmatmul.mubr.f32.gmra.mrb[0].mxu0 %v359
    %v509 = vpop.f32.mrb[0].mxu0
    %v510 = vadd.f32 %v406, %v509
    %v511 = vpop.f32.mrb[0].mxu0
    %512 = vdwg.mxu0
    %v513 = vmax.f32 %v475, 0.0
    %v514 = vmax.f32 %v480, 0.0
    %v515 = vmax.f32 %v485, 0.0
    %v516 = vmax.f32 %v490, 0.0
    %v517 = vmax.f32 %v495, 0.0
    %v518 = vmax.f32 %v500, 0.0
    %v519 = vmax.f32 %v505, 0.0
    %v520 = vmax.f32 %v510, 0.0
    %v521 = vld [vmem:[%s5] sm:$0xff]
    %v522 = vld [vmem:[%s5 + $0x8] sm:$0xff]
    %v523 = vld [vmem:[%s5 + $0x10] sm:$0xff]
    %v524 = vld [vmem:[%s5 + $0x18] sm:$0xff]
    %v525 = vld [vmem:[%s6] sm:$0xff]
    %v526 = vld [vmem:[%s6 + $0x8] sm:$0xff]
    %v527 = vld [vmem:[%s6 + $0x10] sm:$0xff]
    %v528 = vld [vmem:[%s6 + $0x18] sm:$0xff]
    %530 = vset.pattern.permute.xlu0 0
    %531 = vperm.xlu0 %530, %v525
    %v532 = vpop.permute.xlu0 %531
    %535 = vset.pattern.permute.xlu0 0
    %536 = vperm.xlu0 %535, %v526
    %v537 = vpop.permute.xlu0 %536
    %540 = vset.pattern.permute.xlu0 0
    %541 = vperm.xlu0 %540, %v527
    %v542 = vpop.permute.xlu0 %541
    %545 = vset.pattern.permute.xlu0 0
    %546 = vperm.xlu0 %545, %v528
    %v547 = vpop.permute.xlu0 %546
    %vm549 = vcmask 523264
    %v551 = vsel %vm549, %v521, 0
    %v554 = vsel %vm549, %v522, 0
    %v557 = vsel %vm549, %v523, 0
    %v560 = vsel %vm549, %v524, 0
    %562 = vmatprep.subr.mxu0 0.0
    %563 = vmatpush1.msra.mxu0 %v513
    %564 = vmatprep.subr.mxu0 0.0
    %565 = vmatpush1.msra.mxu0 %v514
    %566 = vmatprep.subr.mxu0 0.0
    %567 = vmatpush1.msra.mxu0 %v515
    %568 = vmatprep.subr.mxu0 0.0
    %569 = vmatpush1.msra.mxu0 %v516
    %570 = vmatprep.subr.mxu0 0.0
    %571 = vmatpush1.msra.mxu0 %v517
    %572 = vmatprep.subr.mxu0 0.0
    %573 = vmatpush1.msra.mxu0 %v518
    %574 = vmatprep.subr.mxu0 0.0
    %575 = vmatpush1.msra.mxu0 %v519
    %576 = vmatprep.subr.mxu0 0.0
    %577 = vmatpush1.msra.mxu0 %v520
    %578 = vmatprep.subr.mxu0 0.0
    %579 = vmatpush1.msra.mxu0 0.0
    %580 = vmatprep.subr.mxu0 0.0
    %581 = vmatpush1.msra.mxu0 0.0
    %582 = vmatprep.subr.mxu0 0.0
    %583 = vmatpush1.msra.mxu0 0.0
    %584 = vmatprep.subr.mxu0 0.0
    %585 = vmatpush1.msra.mxu0 0.0
    %586 = vmatprep.subr.mxu0 0.0
    %587 = vmatpush1.msra.mxu0 0.0
    %588 = vmatprep.subr.mxu0 0.0
    %589 = vmatpush1.msra.mxu0 0.0
    %590 = vmatprep.subr.mxu0 0.0
    %591 = vmatpush1.msra.mxu0 0.0
    %592 = vmatprep.subr.mxu0 0.0
    %593 = vmatpush1.msra.mxu0 0.0
    %594 = vmatprep.subr.mxu0 0.0
    %595 = vmatpush1.msra.mxu0 0.0
    %596 = vmatprep.subr.mxu0 0.0
    %597 = vmatpush1.msra.mxu0 0.0
    %598 = vmatprep.subr.mxu0 0.0
    %599 = vmatpush1.msra.mxu0 0.0
    %600 = vmatprep.subr.mxu0 0.0
    %601 = vmatpush1.msra.mxu0 0.0
    %602 = vmatprep.subr.mxu0 0.0
    %603 = vmatpush1.msra.mxu0 0.0
    %604 = vmatprep.subr.mxu0 0.0
    %605 = vmatpush1.msra.mxu0 0.0
    %606 = vmatprep.subr.mxu0 0.0
    %607 = vmatpush1.msra.mxu0 0.0
    %608 = vmatprep.subr.mxu0 0.0
    %609 = vmatpush1.msra.mxu0 0.0
    %610 = vmatprep.subr.mxu0 0.0
    %611 = vmatpush1.msra.mxu0 0.0
    %612 = vmatprep.subr.mxu0 0.0
    %613 = vmatpush1.msra.mxu0 0.0
    %614 = vmatprep.subr.mxu0 0.0
    %615 = vmatpush1.msra.mxu0 0.0
    %616 = vmatprep.subr.mxu0 0.0
    %617 = vmatpush1.msra.mxu0 0.0
    %618 = vmatprep.subr.mxu0 0.0
    %619 = vmatpush1.msra.mxu0 0.0
    %620 = vmatprep.subr.mxu0 0.0
    %621 = vmatpush1.msra.mxu0 0.0
    %622 = vmatprep.subr.mxu0 0.0
    %623 = vmatpush1.msra.mxu0 0.0
    %624 = vmatprep.subr.mxu0 0.0
    %625 = vmatpush1.msra.mxu0 0.0
    %626 = vmatprep.mubr.f32.mxu0 0.0
    %627 = vmatmul.mubr.f32.gmra.mrb[0].mxu0 %v551
    %v628 = vpop.f32.mrb[0].mxu0
    %v629 = vadd.f32 %v532, %v628
    %v630 = vpop.f32.mrb[0].mxu0
    %631 = vmatprep.mubr.f32.mxu0 0.0
    %632 = vmatmul.mubr.f32.gmra.mrb[0].mxu0 %v554
    %v633 = vpop.f32.mrb[0].mxu0
    %v634 = vadd.f32 %v537, %v633
    %v635 = vpop.f32.mrb[0].mxu0
    %636 = vmatprep.mubr.f32.mxu0 0.0
    %637 = vmatmul.mubr.f32.gmra.mrb[0].mxu0 %v557
    %v638 = vpop.f32.mrb[0].mxu0
    %v639 = vadd.f32 %v542, %v638
    %v640 = vpop.f32.mrb[0].mxu0
    %641 = vmatprep.mubr.f32.mxu0 0.0
    %642 = vmatmul.mubr.f32.gmra.mrb[0].mxu0 %v560
    %v643 = vpop.f32.mrb[0].mxu0
    %v644 = vadd.f32 %v547, %v643
    %v645 = vpop.f32.mrb[0].mxu0
    %646 = vdwg.mxu0
    %v647 = vmax.f32 %v629, 0.0
    %v648 = vmax.f32 %v634, 0.0
    %v649 = vmax.f32 %v639, 0.0
    %v650 = vmax.f32 %v644, 0.0
    %v651 = vld [vmem:[%s7] sm:$0xff]
    %v652 = vld [vmem:[%s7 + $0x8] sm:$0xff]
    %v653 = vld [vmem:[%s8] sm:$0xff]
    %v654 = vld [vmem:[%s8 + $0x8] sm:$0xff]
    %656 = vset.pattern.permute.xlu0 0
    %657 = vperm.xlu0 %656, %v653
    %v658 = vpop.permute.xlu0 %657
    %661 = vset.pattern.permute.xlu0 0
    %662 = vperm.xlu0 %661, %v654
    %v663 = vpop.permute.xlu0 %662
    %vm665 = vcmask 261120
    %v667 = vsel %vm665, %v651, 0
    %v670 = vsel %vm665, %v652, 0
    %672 = vmatprep.subr.mxu0 0.0
    %673 = vmatpush1.msra.mxu0 %v647
    %674 = vmatprep.subr.mxu0 0.0
    %675 = vmatpush1.msra.mxu0 %v648
    %676 = vmatprep.subr.mxu0 0.0
    %677 = vmatpush1.msra.mxu0 %v649
    %678 = vmatprep.subr.mxu0 0.0
    %679 = vmatpush1.msra.mxu0 %v650
    %680 = vmatprep.subr.mxu0 0.0
    %681 = vmatpush1.msra.mxu0 0.0
    %682 = vmatprep.subr.mxu0 0.0
    %683 = vmatpush1.msra.mxu0 0.0
    %684 = vmatprep.subr.mxu0 0.0
    %685 = vmatpush1.msra.mxu0 0.0
    %686 = vmatprep.subr.mxu0 0.0
    %687 = vmatpush1.msra.mxu0 0.0
    %688 = vmatprep.subr.mxu0 0.0
    %689 = vmatpush1.msra.mxu0 0.0
    %690 = vmatprep.subr.mxu0 0.0
    %691 = vmatpush1.msra.mxu0 0.0
    %692 = vmatprep.subr.mxu0 0.0
    %693 = vmatpush1.msra.mxu0 0.0
    %694 = vmatprep.subr.mxu0 0.0
    %695 = vmatpush1.msra.mxu0 0.0
    %696 = vmatprep.subr.mxu0 0.0
    %697 = vmatpush1.msra.mxu0 0.0
    %698 = vmatprep.subr.mxu0 0.0
    %699 = vmatpush1.msra.mxu0 0.0
    %700 = vmatprep.subr.mxu0 0.0
    %701 = vmatpush1.msra.mxu0 0.0
    %702 = vmatprep.subr.mxu0 0.0
    %703 = vmatpush1.msra.mxu0 0.0
    %704 = vmatprep.subr.mxu0 0.0
    %705 = vmatpush1.msra.mxu0 0.0
    %706 = vmatprep.subr.mxu0 0.0
    %707 = vmatpush1.msra.mxu0 0.0
    %708 = vmatprep.subr.mxu0 0.0
    %709 = vmatpush1.msra.mxu0 0.0
    %710 = vmatprep.subr.mxu0 0.0
    %711 = vmatpush1.msra.mxu0 0.0
    %712 = vmatprep.subr.mxu0 0.0
    %713 = vmatpush1.msra.mxu0 0.0
    %714 = vmatprep.subr.mxu0 0.0
    %715 = vmatpush1.msra.mxu0 0.0
    %716 = vmatprep.subr.mxu0 0.0
    %717 = vmatpush1.msra.mxu0 0.0
    %718 = vmatprep.subr.mxu0 0.0
    %719 = vmatpush1.msra.mxu0 0.0
    %720 = vmatprep.subr.mxu0 0.0
    %721 = vmatpush1.msra.mxu0 0.0
    %722 = vmatprep.subr.mxu0 0.0
    %723 = vmatpush1.msra.mxu0 0.0
    %724 = vmatprep.subr.mxu0 0.0
    %725 = vmatpush1.msra.mxu0 0.0
    %726 = vmatprep.subr.mxu0 0.0
    %727 = vmatpush1.msra.mxu0 0.0
    %728 = vmatprep.subr.mxu0 0.0
    %729 = vmatpush1.msra.mxu0 0.0
    %730 = vmatprep.subr.mxu0 0.0
    %731 = vmatpush1.msra.mxu0 0.0
    %732 = vmatprep.subr.mxu0 0.0
    %733 = vmatpush1.msra.mxu0 0.0
    %734 = vmatprep.subr.mxu0 0.0
    %735 = vmatpush1.msra.mxu0 0.0
    %736 = vmatprep.mubr.f32.mxu0 0.0
    %737 = vmatmul.mubr.f32.gmra.mrb[0].mxu0 %v667
    %v738 = vpop.f32.mrb[0].mxu0
    %v739 = vadd.f32 %v658, %v738
    %v740 = vpop.f32.mrb[0].mxu0
    %741 = vmatprep.mubr.f32.mxu0 0.0
    %742 = vmatmul.mubr.f32.gmra.mrb[0].mxu0 %v670
    %v743 = vpop.f32.mrb[0].mxu0
    %v744 = vadd.f32 %v663, %v743
    %v745 = vpop.f32.mrb[0].mxu0
    %746 = vdwg.mxu0
    %v747 = vmax.f32 %v739, 0.0
    %v748 = vmax.f32 %v744, 0.0
    %v749 = vld [vmem:[%s9] sm:$0x1]
    %v750 = vld [vmem:[#allocation2] sm:$0x1]
    %752 = vset.pattern.permute.xlu0 0
    %753 = vperm.xlu0 %752, %v750
    %v754 = vpop.permute.xlu0 %753
    %v756 = vlaneseq
    %v757 = vshrl.u32 %v756, 7
    %v758 = vsub.s32 0, %v757
    %v759 = vrot.slane %v754, %v758
    %vm760 = vcmask 130048
    %v762 = vsel %vm760, %v749, 0
    %764 = vmatprep.subr.mxu0 0.0
    %765 = vmatpush1.msra.mxu0 %v747
    %766 = vmatprep.subr.mxu0 0.0
    %767 = vmatpush1.msra.mxu0 %v748
    %768 = vmatprep.subr.mxu0 0.0
    %769 = vmatpush1.msra.mxu0 0.0
    %770 = vmatprep.subr.mxu0 0.0
    %771 = vmatpush1.msra.mxu0 0.0
    %772 = vmatprep.subr.mxu0 0.0
    %773 = vmatpush1.msra.mxu0 0.0
    %774 = vmatprep.subr.mxu0 0.0
    %775 = vmatpush1.msra.mxu0 0.0
    %776 = vmatprep.subr.mxu0 0.0
    %777 = vmatpush1.msra.mxu0 0.0
    %778 = vmatprep.subr.mxu0 0.0
    %779 = vmatpush1.msra.mxu0 0.0
    %780 = vmatprep.subr.mxu0 0.0
    %781 = vmatpush1.msra.mxu0 0.0
    %782 = vmatprep.subr.mxu0 0.0
    %783 = vmatpush1.msra.mxu0 0.0
    %784 = vmatprep.subr.mxu0 0.0
    %785 = vmatpush1.msra.mxu0 0.0
    %786 = vmatprep.subr.mxu0 0.0
    %787 = vmatpush1.msra.mxu0 0.0
    %788 = vmatprep.subr.mxu0 0.0
    %789 = vmatpush1.msra.mxu0 0.0
    %790 = vmatprep.subr.mxu0 0.0
    %791 = vmatpush1.msra.mxu0 0.0
    %792 = vmatprep.subr.mxu0 0.0
    %793 = vmatpush1.msra.mxu0 0.0
    %794 = vmatprep.subr.mxu0 0.0
    %795 = vmatpush1.msra.mxu0 0.0
    %796 = vmatprep.subr.mxu0 0.0
    %797 = vmatpush1.msra.mxu0 0.0
    %798 = vmatprep.subr.mxu0 0.0
    %799 = vmatpush1.msra.mxu0 0.0
    %800 = vmatprep.subr.mxu0 0.0
    %801 = vmatpush1.msra.mxu0 0.0
    %802 = vmatprep.subr.mxu0 0.0
    %803 = vmatpush1.msra.mxu0 0.0
    %804 = vmatprep.subr.mxu0 0.0
    %805 = vmatpush1.msra.mxu0 0.0
    %806 = vmatprep.subr.mxu0 0.0
    %807 = vmatpush1.msra.mxu0 0.0
    %808 = vmatprep.subr.mxu0 0.0
    %809 = vmatpush1.msra.mxu0 0.0
    %810 = vmatprep.subr.mxu0 0.0
    %811 = vmatpush1.msra.mxu0 0.0
    %812 = vmatprep.subr.mxu0 0.0
    %813 = vmatpush1.msra.mxu0 0.0
    %814 = vmatprep.subr.mxu0 0.0
    %815 = vmatpush1.msra.mxu0 0.0
    %816 = vmatprep.subr.mxu0 0.0
    %817 = vmatpush1.msra.mxu0 0.0
    %818 = vmatprep.subr.mxu0 0.0
    %819 = vmatpush1.msra.mxu0 0.0
    %820 = vmatprep.subr.mxu0 0.0
    %821 = vmatpush1.msra.mxu0 0.0
    %822 = vmatprep.subr.mxu0 0.0
    %823 = vmatpush1.msra.mxu0 0.0
    %824 = vmatprep.subr.mxu0 0.0
    %825 = vmatpush1.msra.mxu0 0.0
    %826 = vmatprep.subr.mxu0 0.0
    %827 = vmatpush1.msra.mxu0 0.0
    %828 = vmatprep.mubr.f32.mxu0 0.0
    %829 = vmatmul.mubr.f32.gmra.mrb[0].mxu0 %v762
    %v830 = vpop.f32.mrb[0].mxu0
    %v831 = vadd.f32 %v759, %v830
    %v832 = vpop.f32.mrb[0].mxu0
    %833 = vdwg.mxu0
    %v834 = vsub.f32 0.0, %v831
    %v835 = vmul.f32 %v834, 1.442695
    %v836 = vpow.pop %v835
    %v837 = vadd.f32 %v836, 1.0
    %v838 = vrcp.pop %v837
    %839 = vst [vmem:[#allocation3] sm:$0x1] %v838
    // Predicated region
    $region46: #{tpu_custom_call.1} parent=1 // pred_check
      _
    $region47: #{tpu_custom_call.1} parent=1 // pred_check_branch
      %841 = sbr.rel (0) target = $region49
    $region48: #{tpu_custom_call.1} parent=1 // pred_region
      %s843 = ssub.s32 16, 16
      %844 = vsyncadd [#allocation4], %s843
      %s846 = sshll.u32 [#allocation3], 4
      %s847 = int_to_ptr.vmem [resolvable:$true] %s846
      %849 = dma.vmem_to_hbm [thread:$0]  %s847, 16, %s11, [#allocation4]
    $region49: #{tpu_custom_call.1} parent=1 // pred_fallthru
      _
    // Predicated region
    $region50: #{tpu_custom_call.1} parent=1 // pred_check
      _
    $region51: #{tpu_custom_call.1} parent=1 // pred_check_branch
      %851 = sbr.rel (0) target = $region53
    $region52: #{tpu_custom_call.1} parent=1 // pred_region
      %852 = dma.done [#allocation4], 16
    $region53: #{tpu_custom_call.1} parent=1 // pred_fallthru
      _
    %853 = vsyncpa [#allocation4], 1

</llo_original>
